<compile_context>
chip_gen: v7x
topology: tpu7x:2x2x1
jax: 0.10.0
libtpu: 0.0.40
codegen_flags: <defaults>
</compile_context>

<pallas_src>
import jax
import jax.numpy as jnp
from jax.experimental import pallas as pl
from jax.experimental.pallas import tpu as pltpu


# --------------------------------------------------------------------------
# generation-aware configuration
# --------------------------------------------------------------------------

def _round_up(x, m):
    return ((x + m - 1) // m) * m


def _tpu_vmem_capacity():
    try:
        return int(pltpu.get_tpu_info().vmem_capacity_bytes)
    except Exception:
        return 64 * 1024 * 1024          # conservative fallback (v7x per-TC)


def _tpu_config():
    """Returns (tm_max, th_max, vmem_limit_bytes) for the local TPU generation."""
    vmem_cap = _tpu_vmem_capacity()
    if vmem_cap >= 100 * 1024 * 1024:    # v5e / v6e: 128 MiB physical VMEM
        tm_max, th_max = 512, 512
        vmem_limit = min(int(vmem_cap * 0.85), 110 * 1024 * 1024)
    else:                                 # v7x: 64 MiB per TensorCore
        tm_max, th_max = 256, 256
        vmem_limit = int(vmem_cap * 0.82)  # ~52 MiB of 64
    return tm_max, th_max, vmem_limit


def _vmem_bytes(tm, th, dim, out_itemsize):
    """Estimated VMEM working set (double-buffered tiles + f32 accumulator)."""
    return (2 * tm * dim * 2              # x tile (bf16)
            + 2 * dim * (2 * th) * 2      # [Wg|Wu] tile (bf16)
            + 2 * th * dim * 2            # Wd tile (bf16)
            + 2 * (2 * th) * 4            # [bg|bu] tile (f32)
            + 2 * dim * 4                 # bd (f32)
            + 2 * tm * dim * out_itemsize # output tile
            + tm * dim * 4)               # accumulator scratch (f32)


# --------------------------------------------------------------------------
# kernel
# --------------------------------------------------------------------------

def _mlp_kernel(x_ref, wgu_ref, bgu_ref, wd_ref, bd_ref, o_ref, acc_ref):
    h = pl.program_id(1)
    n_h = pl.num_programs(1)

    x = x_ref[...]                                                   # (tm, dim) bf16

    # fused gate|up projection: one MXU stream per hidden tile
    gu = jnp.dot(x, wgu_ref[...],
                 preferred_element_type=jnp.float32) + bgu_ref[...]  # (tm, 2*th) f32
    th = gu.shape[1] // 2
    gate = gu[:, :th]
    up = gu[:, th:]
    # SiLU(gate) * up, kept in f32 on the VPU/EUP (v5e has no bf16 VPU/EUP)
    fuse = (gate * jax.nn.sigmoid(gate)) * up

    # partial down projection for this hidden tile (f32 accumulation)
    partial = jnp.dot(fuse.astype(wd_ref.dtype), wd_ref[...],
                      preferred_element_type=jnp.float32)            # (tm, dim) f32

    @pl.when(h == 0)
    def _():
        # seed the accumulator with the down-proj bias (saves a separate +bd tail)
        acc_ref[...] = jnp.broadcast_to(bd_ref[...], acc_ref.shape)

    total = acc_ref[...] + partial

    @pl.when(h < n_h - 1)
    def _():
        acc_ref[...] = total

    @pl.when(h == n_h - 1)
    def _():
        # dropout(p=0.0) is the identity; write straight from the fresh sum
        o_ref[...] = total.astype(o_ref.dtype)


# --------------------------------------------------------------------------
# host-side wrappers
# --------------------------------------------------------------------------

def pack_mlp_params(params, *, compute_dtype=jnp.bfloat16, th=None):
    """One-time repack of MLP weights for the fused kernel.

    Casts weights to the compute dtype and interleaves [Wg_tile | Wu_tile] per
    hidden tile so gate+up is a single matmul. Cache the result across steps —
    do NOT call this per forward pass (it costs a full weight HBM round trip).
    """
    dim, hidden = params["wg"].shape
    _, th_max, _ = _tpu_config()

    if th is None:
        cands = [t for t in range(128, min(hidden, th_max) + 1, 128)
                 if hidden % t == 0]
        th = max(cands) if cands else hidden
        # TODO(synk): if hidden has no 128-multiple divisor, pad hidden and mask
        # instead of falling back to th = hidden (VMEM hazard for huge hidden).
    n_h = hidden // th

    wg = params["wg"].astype(compute_dtype).reshape(dim, n_h, th)
    wu = params["wu"].astype(compute_dtype).reshape(dim, n_h, th)
    wgu = jnp.concatenate([wg, wu], axis=-1).reshape(dim, n_h * 2 * th)
    bg = params["bg"].astype(jnp.float32).reshape(1, n_h, th)
    bu = params["bu"].astype(jnp.float32).reshape(1, n_h, th)
    bgu = jnp.concatenate([bg, bu], axis=-1).reshape(1, n_h * 2 * th)

    return {
        "wgu": wgu,
        "bgu": bgu,
        "wd": params["wd"].astype(compute_dtype),                    # (hidden, dim)
        "bd": params["bd"].astype(jnp.float32),                      # (1, dim)
        "dim": dim,
        "hidden": hidden,
        "th": th,
        "n_h": n_h,
        "compute_dtype": compute_dtype,
    }


def mlp_forward(x, packed, *, out_dtype=jnp.float32, tm=None):
    """x: (N, dim) float32. packed: output of pack_mlp_params (cached slabs)."""
    N, dim = x.shape
    assert dim == packed["dim"], "feature dim mismatch with packed params"
    hidden, th, n_h = packed["hidden"], packed["th"], packed["n_h"]
    compute_dtype = packed["compute_dtype"]

    tm_max, _, vmem_limit = _tpu_config()
    out_itemsize = jnp.dtype(out_dtype).itemsize

    if tm is None:
        # small N: avoid padded-row waste; large N: raise arithmetic intensity
        tm = min(_round_up(max(N, 1), 16), tm_max)
        # shrink the row tile until the double-buffered working set fits VMEM
        while tm > 16 and _vmem_bytes(tm, th, dim, out_itemsize) > int(vmem_limit * 0.9):
            tm = max(16, _round_up(tm // 2, 16))
    # TODO(synk): for tiny N on v7x (single row tile) split the hidden axis across
    # the two TensorCores with per-core partial accumulators and a final add.

    xc = x.astype(compute_dtype)
    n_pad = (-N) % tm
    if n_pad:
        xc = jnp.pad(xc, ((0, n_pad), (0, 0)))
    n_rows = N + n_pad
    n_i = n_rows // tm

    grid = (n_i, n_h)
    flops = 6 * n_rows * dim * hidden                                # gate + up + down
    bytes_accessed = (
        xc.size * 2                                                  # activations once
        + n_i * (packed["wgu"].size * 2 + packed["wd"].size * 2      # weights per row tile
                 + packed["bgu"].size * 4 + packed["bd"].size * 4)
        + n_rows * dim * out_itemsize)                               # output writeback

    kernel = pl.pallas_call(
        _mlp_kernel,
        out_shape=jax.ShapeDtypeStruct((n_rows, dim), out_dtype),
        grid_spec=pltpu.PrefetchScalarGridSpec(
            num_scalar_prefetch=0,
            grid=grid,
            in_specs=[
                pl.BlockSpec((tm, dim), lambda i, h: (i, 0)),        # x rows
                pl.BlockSpec((dim, 2 * th), lambda i, h: (0, h)),    # [Wg|Wu] tile
                pl.BlockSpec((1, 2 * th), lambda i, h: (0, h)),      # [bg|bu] tile
                pl.BlockSpec((th, dim), lambda i, h: (h, 0)),        # Wd tile
                pl.BlockSpec((1, dim), lambda i, h: (0, 0)),         # bd
            ],
            out_specs=pl.BlockSpec((tm, dim), lambda i, h: (i, 0)),
            scratch_shapes=[pltpu.VMEM((tm, dim), jnp.float32)],
        ),
        compiler_params=pltpu.CompilerParams(
            dimension_semantics=("parallel", "arbitrary"),
            vmem_limit_bytes=int(vmem_limit),
        ),
        cost_estimate=pl.CostEstimate(
            flops=int(flops),
            transcendentals=int(n_rows * hidden),
            bytes_accessed=int(bytes_accessed),
        ),
    )
    out = kernel(xc, packed["wgu"], packed["bgu"], packed["wd"], packed["bd"])
    return out[:N]


# --------------------------------------------------------------------------
# init + references
# --------------------------------------------------------------------------

def init_mlp_params(key, dim):
    """Deterministic init mimicking nn.Linear's U(-1/sqrt(fan_in), 1/sqrt(fan_in))."""
    hidden = 4 * dim
    ks = jax.random.split(key, 6)

    def lin(kw, kb, fan_in, fan_out):
        bound = 1.0 / jnp.sqrt(fan_in)
        # stored as (in, out), i.e. already W^T relative to torch's (out, in)
        w = jax.random.uniform(kw, (fan_in, fan_out), jnp.float32, -bound, bound)
        b = jax.random.uniform(kb, (1, fan_out), jnp.float32, -bound, bound)
        return w, b

    wg, bg = lin(ks[0], ks[1], dim, hidden)
    wu, bu = lin(ks[2], ks[3], dim, hidden)
    wd, bd = lin(ks[4], ks[5], hidden, dim)
    return {"wg": wg, "bg": bg, "wu": wu, "bu": bu, "wd": wd, "bd": bd}


def mlp_reference(x, params):
    """Pure-f32 reference matching the PyTorch module semantics."""
    gate = x @ params["wg"] + params["bg"]
    up = x @ params["wu"] + params["bu"]
    fuse = jax.nn.silu(gate) * up
    return fuse @ params["wd"] + params["bd"]


def mlp_reference_bf16(x, params):
    """Emulates the kernel's bf16-inputs / f32-accumulation numerics."""
    c = jnp.bfloat16
    xb = x.astype(c)
    gate = jnp.dot(xb, params["wg"].astype(c),
                   preferred_element_type=jnp.float32) + params["bg"]
    up = jnp.dot(xb, params["wu"].astype(c),
                 preferred_element_type=jnp.float32) + params["bu"]
    fuse = (jax.nn.silu(gate) * up).astype(c)
    return jnp.dot(fuse, params["wd"].astype(c),
                   preferred_element_type=jnp.float32) + params["bd"]


if __name__ == "__main__":
    batch, seq, dim = 2, 8, 128          # hidden_dim = 4 * dim = 512
    key = jax.random.PRNGKey(0)
    k_x, k_p = jax.random.split(key)

    x = jax.random.normal(k_x, (batch, seq, dim), jnp.float32)
    params = init_mlp_params(k_p, dim)

    # one-time weight repack (cached across forward passes)
    packed = pack_mlp_params(params)

    x2d = x.reshape(batch * seq, dim)    # (N, dim), feature axis last / lane-dense
    out = mlp_forward(x2d, packed)       # f32 output (pass out_dtype=bf16 to halve writeback)
    out = jax.block_until_ready(out).reshape(batch, seq, dim)

    ref_bf16 = mlp_reference_bf16(x2d, params).reshape(batch, seq, dim)
    ref_f32 = mlp_reference(x2d, params).reshape(batch, seq, dim)

    assert out.shape == (batch, seq, dim)
    assert jnp.allclose(out, ref_bf16, atol=2e-2, rtol=2e-2), \
        "mismatch vs bf16-emulated reference"
    assert jnp.allclose(out, ref_f32, atol=7e-2, rtol=7e-2), \
        "mismatch vs f32 reference"

    print("KERNEL_OK")
</pallas_src>

<mosaic_0001>
module attributes {stable_mosaic.version = 11 : i64} {
  func.func @_mlp_kernel(%arg0: i32, %arg1: i32, %arg2: memref<16x128xbf16, #tpu.memory_space<vmem>>, %arg3: memref<128x512xbf16, #tpu.memory_space<vmem>>, %arg4: memref<1x512xf32, #tpu.memory_space<vmem>>, %arg5: memref<256x128xbf16, #tpu.memory_space<vmem>>, %arg6: memref<1x128xf32, #tpu.memory_space<vmem>>, %arg7: memref<16x128xf32, #tpu.memory_space<vmem>>, %arg8: memref<16x128xf32, #tpu.memory_space<vmem>>) attributes {dimension_semantics = [#tpu.dimension_semantics<parallel>, #tpu.dimension_semantics<arbitrary>], iteration_bounds = array<i64: 1, 2>, scalar_prefetch = 0 : i64, scratch_operands = 1 : i64, tpu.core_type = #tpu.core_type<tc>, window_params = [{transform_indices = @transform_0, window_bounds = array<i64: 16, 128>}, {transform_indices = @transform_1, window_bounds = array<i64: 128, 512>}, {transform_indices = @transform_2, window_bounds = array<i64: 1, 512>}, {transform_indices = @transform_3, window_bounds = array<i64: 256, 128>}, {pipeline_mode = #tpu.pipeline_mode<synchronous>, transform_indices = @transform_4, window_bounds = array<i64: 1, 128>}, {transform_indices = @transform_5, window_bounds = array<i64: 16, 128>}]} {
    %c0 = arith.constant 0 : index
    %c0_0 = arith.constant 0 : index
    %0 = vector.load %arg2[%c0, %c0_0] : memref<16x128xbf16, #tpu.memory_space<vmem>>, vector<16x128xbf16>
    %c0_1 = arith.constant 0 : index
    %c0_2 = arith.constant 0 : index
    %1 = vector.load %arg3[%c0_1, %c0_2] : memref<128x512xbf16, #tpu.memory_space<vmem>>, vector<128x512xbf16>
    %cst = arith.constant dense<0.000000e+00> : vector<16x512xf32>
    %2 = tpu.matmul %0, %1, %cst {dimension_numbers = #tpu.dot_dimension_numbers<[1], [0], [0], [1], [0, 0, 1, 1], [], []>} : vector<16x128xbf16>, vector<128x512xbf16>, vector<16x512xf32> -> vector<16x512xf32>
    %c0_3 = arith.constant 0 : index
    %c0_4 = arith.constant 0 : index
    %3 = vector.load %arg4[%c0_3, %c0_4] : memref<1x512xf32, #tpu.memory_space<vmem>>, vector<1x512xf32>
    %4 = vector.broadcast %3 : vector<1x512xf32> to vector<16x512xf32>
    %5 = arith.addf %2, %4 : vector<16x512xf32>
    %6 = vector.extract_strided_slice %5 {offsets = [0, 0], sizes = [16, 256], strides = [1, 1]} : vector<16x512xf32> to vector<16x256xf32>
    %7 = vector.extract_strided_slice %5 {offsets = [0, 256], sizes = [16, 256], strides = [1, 1]} : vector<16x512xf32> to vector<16x256xf32>
    %8 = arith.negf %6 : vector<16x256xf32>
    %9 = math.exp %8 : vector<16x256xf32>
    %cst_5 = arith.constant 1.000000e+00 : f32
    %10 = vector.broadcast %cst_5 : f32 to vector<16x256xf32>
    %11 = arith.addf %10, %9 : vector<16x256xf32>
    %12 = arith.divf %10, %11 : vector<16x256xf32>
    %13 = arith.mulf %6, %12 : vector<16x256xf32>
    %14 = arith.mulf %13, %7 : vector<16x256xf32>
    %15 = arith.truncf %14 : vector<16x256xf32> to vector<16x256xbf16>
    %c0_6 = arith.constant 0 : index
    %c0_7 = arith.constant 0 : index
    %16 = vector.load %arg5[%c0_6, %c0_7] : memref<256x128xbf16, #tpu.memory_space<vmem>>, vector<256x128xbf16>
    %cst_8 = arith.constant dense<0.000000e+00> : vector<16x128xf32>
    %17 = tpu.matmul %15, %16, %cst_8 {dimension_numbers = #tpu.dot_dimension_numbers<[1], [0], [0], [1], [0, 0, 1, 1], [], []>} : vector<16x256xbf16>, vector<256x128xbf16>, vector<16x128xf32> -> vector<16x128xf32>
    %c0_i32 = arith.constant 0 : i32
    %18 = arith.cmpi eq, %arg1, %c0_i32 : i32
    %19 = arith.extui %18 : i1 to i32
    %c0_i32_9 = arith.constant 0 : i32
    %20 = arith.cmpi ne, %19, %c0_i32_9 : i32
    scf.if %20 {
      %c0_15 = arith.constant 0 : index
      %c0_16 = arith.constant 0 : index
      %29 = vector.load %arg6[%c0_15, %c0_16] : memref<1x128xf32, #tpu.memory_space<vmem>>, vector<1x128xf32>
      %30 = vector.shape_cast %29 : vector<1x128xf32> to vector<1x128xf32>
      %31 = vector.broadcast %30 : vector<1x128xf32> to vector<16x128xf32>
      %c0_17 = arith.constant 0 : index
      %c0_18 = arith.constant 0 : index
      %32 = vector.load %arg8[%c0_17, %c0_18] : memref<16x128xf32, #tpu.memory_space<vmem>>, vector<16x128xf32>
      tpu.vector_store %arg8[%c0_17, %c0_18], %31 {strides = array<i32>} : memref<16x128xf32, #tpu.memory_space<vmem>>, vector<16x128xf32>,
    } else {
    }
    %c0_10 = arith.constant 0 : index
    %c0_11 = arith.constant 0 : index
    %21 = vector.load %arg8[%c0_10, %c0_11] : memref<16x128xf32, #tpu.memory_space<vmem>>, vector<16x128xf32>
    %22 = arith.addf %21, %17 : vector<16x128xf32>
    %c1_i32 = arith.constant 1 : i32
    %23 = arith.cmpi slt, %arg1, %c1_i32 : i32
    %24 = arith.extui %23 : i1 to i32
    %c0_i32_12 = arith.constant 0 : i32
    %25 = arith.cmpi ne, %24, %c0_i32_12 : i32
    scf.if %25 {
      %c0_15 = arith.constant 0 : index
      %c0_16 = arith.constant 0 : index
      %29 = vector.load %arg8[%c0_15, %c0_16] : memref<16x128xf32, #tpu.memory_space<vmem>>, vector<16x128xf32>
      tpu.vector_store %arg8[%c0_15, %c0_16], %22 {strides = array<i32>} : memref<16x128xf32, #tpu.memory_space<vmem>>, vector<16x128xf32>,
    } else {
    }
    %c1_i32_13 = arith.constant 1 : i32
    %26 = arith.cmpi eq, %arg1, %c1_i32_13 : i32
    %27 = arith.extui %26 : i1 to i32
    %c0_i32_14 = arith.constant 0 : i32
    %28 = arith.cmpi ne, %27, %c0_i32_14 : i32
    scf.if %28 {
      %c0_15 = arith.constant 0 : index
      %c0_16 = arith.constant 0 : index
      %29 = vector.load %arg7[%c0_15, %c0_16] : memref<16x128xf32, #tpu.memory_space<vmem>>, vector<16x128xf32>
      tpu.vector_store %arg7[%c0_15, %c0_16], %22 {strides = array<i32>} : memref<16x128xf32, #tpu.memory_space<vmem>>, vector<16x128xf32>,
    } else {
    }
    return
  }
  func.func @transform_0(%arg0: i32, %arg1: i32) -> (i32, i32) {
    %c0_i32 = arith.constant 0 : i32
    %c0_i32_0 = arith.constant 0 : i32
    return %arg0, %c0_i32 : i32, i32
  }
  func.func @transform_1(%arg0: i32, %arg1: i32) -> (i32, i32) {
    %c0_i32 = arith.constant 0 : i32
    %c0_i32_0 = arith.constant 0 : i32
    return %c0_i32, %arg1 : i32, i32
  }
  func.func @transform_2(%arg0: i32, %arg1: i32) -> (i32, i32) {
    %c0_i32 = arith.constant 0 : i32
    %c0_i32_0 = arith.constant 0 : i32
    return %c0_i32, %arg1 : i32, i32
  }
  func.func @transform_3(%arg0: i32, %arg1: i32) -> (i32, i32) {
    %c0_i32 = arith.constant 0 : i32
    %c0_i32_0 = arith.constant 0 : i32
    return %arg1, %c0_i32 : i32, i32
  }
  func.func @transform_4(%arg0: i32, %arg1: i32) -> (i32, i32) {
    %c0_i32 = arith.constant 0 : i32
    %c0_i32_0 = arith.constant 0 : i32
    %c0_i32_1 = arith.constant 0 : i32
    return %c0_i32, %c0_i32_0 : i32, i32
  }
  func.func @transform_5(%arg0: i32, %arg1: i32) -> (i32, i32) {
    %c0_i32 = arith.constant 0 : i32
    %c0_i32_0 = arith.constant 0 : i32
    return %arg0, %c0_i32 : i32, i32
  }
}

</mosaic_0001>

<llo_original>
// kernel: tpu_custom_call.1
$region0: #{tpu_custom_call.1}
  #allocation0 [shape = 'u32[]', space=smem, size = 0x4, offset = 0x4, fixed_abs, tag = 'smem constant byte address 0x4 - core index']
  #allocation1 [shape = 'u32[144,128]{1,0:T(1,128)}', space=vmem, size = 0x12000, scoped, tag = 'internal scratch']
  #allocation2 [shape = 'f32[16,128]{1,0:T(8,128)}', space=vmem, size = 0x2000, scoped, tag = 'scratch operand']
  %s0 = inlined_call_operand.hbm [shape: bf16[16,128], index: 0, kind: input, shape index: {}]
  %s1 = inlined_call_operand.hbm [shape: bf16[128,1024], index: 1, kind: input, shape index: {}]
  %s2 = inlined_call_operand.hbm [shape: f32[1,1024], index: 2, kind: input, shape index: {}]
  %s3 = inlined_call_operand.hbm [shape: bf16[512,128], index: 3, kind: input, shape index: {}]
  %s4 = inlined_call_operand.vmem [shape: f32[1,128], index: 4, kind: input, shape index: {}]
  %s5 = inlined_call_operand.hbm [shape: f32[16,128], index: 5, kind: output, shape index: {}]
  %s6 = sld [smem:[#allocation0]]
  $region81: #{tpu_custom_call.1} parent=0
    _
  %s8 = ssub.s32 1, %s6
  %s9 = scalar_select 0, %s8, %s6
  $region1: #{tpu_custom_call.1} parent=0
    #allocation3 [shape = 'u8[4096]{0}', space=vmem, size = 0x1000, scoped, tag = 'input window, operand 0, single buffered']
    #allocation4 [shape = 's32[2]{0}', space=sflag, size = 0x8, scoped, tag = 'scoped memory for tpu_custom_call.1']
    #allocation5 [shape = 's32[2]{0}', space=sflag, size = 0x8, scoped, tag = 'scoped memory for tpu_custom_call.1']
    #allocation6 [shape = 'u8[262144]{0}', space=vmem, size = 0x40000, scoped, tag = 'input window, operand 1']
    #allocation7 [shape = 's32[2]{0}', space=sflag, size = 0x8, scoped, tag = 'scoped memory for tpu_custom_call.1']
    #allocation8 [shape = 'u8[4096]{0}', space=vmem, size = 0x1000, scoped, tag = 'input window, operand 2']
    #allocation9 [shape = 'u8[131072]{0}', space=vmem, size = 0x20000, scoped, tag = 'input window, operand 3']
    #allocation10 [shape = 's32[2]{0}', space=sflag, size = 0x8, scoped, tag = 'scoped memory for tpu_custom_call.1']
    #allocation11 [shape = 'u8[8192]{0}', space=vmem, size = 0x2000, scoped, tag = 'output window, operand 0, single buffered']
    %10 = vsyncpa [#allocation4], 0
    %11 = vsyncpa [#allocation7], 0
    %s12 = scalar_lea.sflag [#allocation7], 1
    %13 = vsyncpa %s12, 0
    %14 = vsyncpa [#allocation10], 0
    %s15 = scalar_lea.sflag [#allocation10], 1
    %16 = vsyncpa %s15, 0
    %17 = vsyncpa [#allocation5], 0
    loop: start=0, step=1, limit=4
    $region2: #{tpu_custom_call.1} parent=1 // loop_pre_header
      _
    $region3: #{tpu_custom_call.1} parent=1 // loop_header
      %s19 = sphi 0, %s23
      %p20 = scmp.ge.s32.totalorder %s19, 4
      %s26 = sphi 0, %s38
      %s27 = sphi 0, %s34
      %s28 = sphi 0, %s26
      %s29 = sphi 0, %s27
      %s30 = sphi 0, %s28
      %s31 = sphi 0, %s29
      %s41 = sphi 0, %s43
      %s44 = sphi 0, %s41
      %s45 = sphi 0, %s44
      %s61 = sphi 0, %s45
      %s67 = sphi 0, %s69
      %s70 = sphi 0, %s67
      %s71 = sphi 0, %s70
      %s87 = sphi 0, %s71
      %s93 = sphi 0, %s95
      %s96 = sphi 0, %s93
      %s97 = sphi 0, %s96
      %s113 = sphi 0, %s97
      %s119 = sphi 0, %s121
      %s122 = sphi 0, %s119
      %s123 = sphi 0, %s122
      %s139 = sphi 0, %s123
      %s143 = sphi 0, %s143
      %s145 = sphi 0, %s143
      %s146 = sphi 0, %s145
      %s160 = sphi 0, %s146
      %s166 = sphi 0, %s168
      %s169 = sphi 0, %s166
      %s170 = sphi 0, %s169
      %s186 = sphi 0, %s170
    $region4: #{tpu_custom_call.1} parent=1 // loop_header_branch
      %22 = sbr.rel (%p20) target = $region8
    $region5: #{tpu_custom_call.1} parent=1 // loop_body
      %s24 = ssub.s32 %s19, 1
      %s25 = ssub.s32 %s19, 2
      %s32 = sadd.s32 1, %s27
      %p33 = scmp.ge.s32.totalorder %s32, 2
      %s34 = scalar_select %p33, 0, %s32
      %s35 = sadd.s32 1, %s26
      %s36 = scalar_select %p33, %s35, %s26
      %p37 = scmp.ge.s32.totalorder %s36, 1
      %s38 = scalar_select %p37, 0, %s36
      %s39 = ssub.s32 %s26, %s38
      %p40 = scmp.eq.s32.totalorder %s39, 0
      %s42 = sadd.s32 %s41, 1
      %s43 = scalar_select %p40, %s41, %s42
      %p46 = pneg %p40
      %p47 = scmp.eq.s32.totalorder %s19, 1
      %p48 = por %p46, %p47
      %p49 = scmp.ne.s32.totalorder %s41, %s44
      %p50 = scmp.eq.s32.totalorder %s19, 0
      %p51 = por %p49, %p50
      %p52 = scmp.ne.s32.totalorder %s41, %s44
      %p53 = scmp.eq.s32.totalorder %s24, 1
      %p54 = por %p52, %p53
      %p55 = scmp.ne.s32.totalorder %s44, %s45
      %p56 = scmp.eq.s32.totalorder %s24, 0
      %p57 = por %p55, %p56
      %p58 = scmp.ne.s32.totalorder %s44, %s45
      %p59 = scmp.eq.s32.totalorder %s25, 1
      %p60 = por %p58, %p59
      %p62 = scmp.ne.s32.totalorder %s45, %s61
      %p63 = scmp.eq.s32.totalorder %s25, 0
      %p64 = por %p62, %p63
      %s65 = ssub.s32 %s27, %s34
      %p66 = scmp.eq.s32.totalorder %s65, 0
      %s68 = sadd.s32 %s67, 1
      %s69 = scalar_select %p66, %s67, %s68
      %p72 = pneg %p66
      %p73 = scmp.eq.s32.totalorder %s19, 1
      %p74 = por %p72, %p73
      %p75 = scmp.ne.s32.totalorder %s67, %s70
      %p76 = scmp.eq.s32.totalorder %s19, 0
      %p77 = por %p75, %p76
      %p78 = scmp.ne.s32.totalorder %s67, %s70
      %p79 = scmp.eq.s32.totalorder %s24, 1
      %p80 = por %p78, %p79
      %p81 = scmp.ne.s32.totalorder %s70, %s71
      %p82 = scmp.eq.s32.totalorder %s24, 0
      %p83 = por %p81, %p82
      %p84 = scmp.ne.s32.totalorder %s70, %s71
      %p85 = scmp.eq.s32.totalorder %s25, 1
      %p86 = por %p84, %p85
      %p88 = scmp.ne.s32.totalorder %s71, %s87
      %p89 = scmp.eq.s32.totalorder %s25, 0
      %p90 = por %p88, %p89
      %s91 = ssub.s32 %s27, %s34
      %p92 = scmp.eq.s32.totalorder %s91, 0
      %s94 = sadd.s32 %s93, 1
      %s95 = scalar_select %p92, %s93, %s94
      %p98 = pneg %p92
      %p99 = scmp.eq.s32.totalorder %s19, 1
      %p100 = por %p98, %p99
      %p101 = scmp.ne.s32.totalorder %s93, %s96
      %p102 = scmp.eq.s32.totalorder %s19, 0
      %p103 = por %p101, %p102
      %p104 = scmp.ne.s32.totalorder %s93, %s96
      %p105 = scmp.eq.s32.totalorder %s24, 1
      %p106 = por %p104, %p105
      %p107 = scmp.ne.s32.totalorder %s96, %s97
      %p108 = scmp.eq.s32.totalorder %s24, 0
      %p109 = por %p107, %p108
      %p110 = scmp.ne.s32.totalorder %s96, %s97
      %p111 = scmp.eq.s32.totalorder %s25, 1
      %p112 = por %p110, %p111
      %p114 = scmp.ne.s32.totalorder %s97, %s113
      %p115 = scmp.eq.s32.totalorder %s25, 0
      %p116 = por %p114, %p115
      %s117 = ssub.s32 %s27, %s34
      %p118 = scmp.eq.s32.totalorder %s117, 0
      %s120 = sadd.s32 %s119, 1
      %s121 = scalar_select %p118, %s119, %s120
      %p124 = pneg %p118
      %p125 = scmp.eq.s32.totalorder %s19, 1
      %p126 = por %p124, %p125
      %p127 = scmp.ne.s32.totalorder %s119, %s122
      %p128 = scmp.eq.s32.totalorder %s19, 0
      %p129 = por %p127, %p128
      %p130 = scmp.ne.s32.totalorder %s119, %s122
      %p131 = scmp.eq.s32.totalorder %s24, 1
      %p132 = por %p130, %p131
      %p133 = scmp.ne.s32.totalorder %s122, %s123
      %p134 = scmp.eq.s32.totalorder %s24, 0
      %p135 = por %p133, %p134
      %p136 = scmp.ne.s32.totalorder %s122, %s123
      %p137 = scmp.eq.s32.totalorder %s25, 1
      %p138 = por %p136, %p137
      %p140 = scmp.ne.s32.totalorder %s123, %s139
      %p141 = scmp.eq.s32.totalorder %s25, 0
      %p142 = por %p140, %p141
      %s144 = sadd.s32 %s143, 1
      %p147 = scmp.eq.s32.totalorder %s19, 1
      %p148 = scmp.ne.s32.totalorder %s143, %s145
      %p149 = scmp.eq.s32.totalorder %s19, 0
      %p150 = por %p148, %p149
      %p151 = scmp.ne.s32.totalorder %s143, %s145
      %p152 = scmp.eq.s32.totalorder %s24, 1
      %p153 = por %p151, %p152
      %p154 = scmp.ne.s32.totalorder %s145, %s146
      %p155 = scmp.eq.s32.totalorder %s24, 0
      %p156 = por %p154, %p155
      %p157 = scmp.ne.s32.totalorder %s145, %s146
      %p158 = scmp.eq.s32.totalorder %s25, 1
      %p159 = por %p157, %p158
      %p161 = scmp.ne.s32.totalorder %s146, %s160
      %p162 = scmp.eq.s32.totalorder %s25, 0
      %p163 = por %p161, %p162
      %s164 = ssub.s32 %s26, %s38
      %p165 = scmp.eq.s32.totalorder %s164, 0
      %s167 = sadd.s32 %s166, 1
      %s168 = scalar_select %p165, %s166, %s167
      %p171 = pneg %p165
      %p172 = scmp.eq.s32.totalorder %s19, 1
      %p173 = por %p171, %p172
      %p174 = scmp.ne.s32.totalorder %s166, %s169
      %p175 = scmp.eq.s32.totalorder %s19, 0
      %p176 = por %p174, %p175
      %p177 = scmp.ne.s32.totalorder %s166, %s169
      %p178 = scmp.eq.s32.totalorder %s24, 1
      %p179 = por %p177, %p178
      %p180 = scmp.ne.s32.totalorder %s169, %s170
      %p181 = scmp.eq.s32.totalorder %s24, 0
      %p182 = por %p180, %p181
      %p183 = scmp.ne.s32.totalorder %s169, %s170
      %p184 = scmp.eq.s32.totalorder %s25, 1
      %p185 = por %p183, %p184
      %p187 = scmp.ne.s32.totalorder %s170, %s186
      %p188 = scmp.eq.s32.totalorder %s25, 0
      %p189 = por %p187, %p188
      %p190 = scmp.le.s32.totalorder 1, %s19
      %p191 = scmp.lt.s32.totalorder %s19, 3
      %p192 = pnand %p190, %p191
      %p193 = pneg %p192
      // Predicated region
      $region9: #{tpu_custom_call.1} parent=5 // pred_check
        _
      $region10: #{tpu_custom_call.1} parent=5 // pred_check_branch
        %195 = sbr.rel (%p192) target = $region12
      $region11: #{tpu_custom_call.1} parent=5 // pred_region
        %s196 = ssub.s32 %s19, 1
        // Predicated region
        $region13: #{tpu_custom_call.1} parent=11 // pred_check
          %p197 = pneg %p57
        $region14: #{tpu_custom_call.1} parent=11 // pred_check_branch
          %199 = sbr.rel (%p197) target = $region16
        $region15: #{tpu_custom_call.1} parent=11 // pred_region
          %s200 = smul.u32 2, %s28
          %s202 = ssub.s32 128, 128
          %203 = vsyncadd [#allocation4], %s202
          %s204 = smul.addr %s200, 64
          %s205 = scalar_lea.hbm %s0, %s204
          %s206 = sshll.u32 [#allocation3], 4
          %s207 = int_to_ptr.vmem [resolvable:$true] %s206
          %212 = dma.hbm_to_vmem [thread:$0]  %s205, 128, %s207, [#allocation4], 64, 64, 4
        $region16: #{tpu_custom_call.1} parent=11 // pred_fallthru
          _
        // Predicated region
        $region17: #{tpu_custom_call.1} parent=11 // pred_check
          %p213 = pneg %p156
        $region18: #{tpu_custom_call.1} parent=11 // pred_check_branch
          %215 = sbr.rel (%p213) target = $region20
        $region19: #{tpu_custom_call.1} parent=11 // pred_region
          _
        $region20: #{tpu_custom_call.1} parent=11 // pred_fallthru
          _
      $region12: #{tpu_custom_call.1} parent=5 // pred_fallthru
        _
      %p216 = scmp.lt.s32.totalorder %s19, 2
      // Predicated region
      $region21: #{tpu_custom_call.1} parent=5 // pred_check
        %p217 = pneg %p216
      $region22: #{tpu_custom_call.1} parent=5 // pred_check_branch
        %219 = sbr.rel (%p217) target = $region24
      $region23: #{tpu_custom_call.1} parent=5 // pred_region
        // Predicated region
        $region25: #{tpu_custom_call.1} parent=23 // pred_check
          %p220 = pneg %p77
        $region26: #{tpu_custom_call.1} parent=23 // pred_check_branch
          %222 = sbr.rel (%p220) target = $region28
        $region27: #{tpu_custom_call.1} parent=23 // pred_region
          %s223 = sand.u32 %s19, 1
          %s224 = scalar_lea.sflag [#allocation7], %s223
          %s225 = sand.u32 %s67, 1
          %s226 = smul.addr %s225, 256
          %s227 = scalar_lea.vmem [#allocation6], %s226
          %s228 = smul.u32 4, %s27
          %s230 = ssub.s32 4096, 4096
          %231 = vsyncadd %s224, %s230
          %s232 = smul.addr %s228, 64
          %s233 = scalar_lea.hbm %s1, %s232
          %s234 = sshll.u32 %s227, 4
          %s235 = int_to_ptr.vmem [resolvable:$true] %s234
          %240 = dma.hbm_to_vmem [thread:$0]  %s233, 4096, %s235, %s224, 512, 256, 16
        $region28: #{tpu_custom_call.1} parent=23 // pred_fallthru
          _
        // Predicated region
        $region29: #{tpu_custom_call.1} parent=23 // pred_check
          %p241 = pneg %p103
        $region30: #{tpu_custom_call.1} parent=23 // pred_check_branch
          %243 = sbr.rel (%p241) target = $region32
        $region31: #{tpu_custom_call.1} parent=23 // pred_region
          %s244 = sand.u32 %s19, 1
          %s245 = scalar_lea.sflag [#allocation7], %s244
          %s246 = sand.u32 %s93, 1
          %s247 = smul.addr %s246, 4
          %s248 = scalar_lea.vmem [#allocation8], %s247
          %s249 = smul.u32 4, %s27
          %s251 = ssub.s32 64, 64
          %252 = vsyncadd %s245, %s251
          %s253 = smul.addr %s249, 16
          %s254 = scalar_lea.hbm %s2, %s253
          %s256 = sshll.u32 %s248, 4
          %s257 = int_to_ptr.vmem [resolvable:$true] %s256
          %259 = dma.hbm_to_vmem [thread:$0]  %s254, 64, %s257, %s245
        $region32: #{tpu_custom_call.1} parent=23 // pred_fallthru
          _
        // Predicated region
        $region33: #{tpu_custom_call.1} parent=23 // pred_check
          %p260 = pneg %p129
        $region34: #{tpu_custom_call.1} parent=23 // pred_check_branch
          %262 = sbr.rel (%p260) target = $region36
        $region35: #{tpu_custom_call.1} parent=23 // pred_region
          %s263 = sand.u32 %s119, 1
          %s264 = scalar_lea.sflag [#allocation10], %s263
          %s265 = sand.u32 %s119, 1
          %s266 = smul.addr %s265, 128
          %s267 = scalar_lea.vmem [#allocation9], %s266
          %s268 = smul.u32 32, %s27
          %s270 = ssub.s32 2048, 2048
          %271 = vsyncadd %s264, %s270
          %s272 = smul.addr %s268, 64
          %s273 = scalar_lea.hbm %s3, %s272
          %s274 = sshll.u32 %s267, 4
          %s275 = int_to_ptr.vmem [resolvable:$true] %s274
          %280 = dma.hbm_to_vmem [thread:$0]  %s273, 2048, %s275, %s264, 64, 64, 4
        $region36: #{tpu_custom_call.1} parent=23 // pred_fallthru
          _
      $region24: #{tpu_custom_call.1} parent=5 // pred_fallthru
        _
      %p281 = scmp.le.s32.totalorder 1, %s19
      %p282 = scmp.lt.s32.totalorder %s19, 3
      %p283 = pnand %p281, %p282
      %p284 = pneg %p283
      // Predicated region
      $region37: #{tpu_custom_call.1} parent=5 // pred_check
        _
      $region38: #{tpu_custom_call.1} parent=5 // pred_check_branch
        %286 = sbr.rel (%p283) target = $region40
      $region39: #{tpu_custom_call.1} parent=5 // pred_region
        %s287 = ssub.s32 %s19, 1
        // Predicated region
        $region41: #{tpu_custom_call.1} parent=39 // pred_check
          %p288 = pneg %p57
        $region42: #{tpu_custom_call.1} parent=39 // pred_check_branch
          %290 = sbr.rel (%p288) target = $region44
        $region43: #{tpu_custom_call.1} parent=39 // pred_region
          %291 = dma.done [#allocation4], 128
        $region44: #{tpu_custom_call.1} parent=39 // pred_fallthru
          _
        %s292 = sand.u32 %s24, 1
        %s293 = scalar_lea.sflag [#allocation7], %s292
        %s294 = sand.u32 %s70, 1
        %s295 = smul.addr %s294, 256
        %s296 = scalar_lea.vmem [#allocation6], %s295
        // Predicated region
        $region45: #{tpu_custom_call.1} parent=39 // pred_check
          %p297 = pneg %p83
        $region46: #{tpu_custom_call.1} parent=39 // pred_check_branch
          %299 = sbr.rel (%p297) target = $region48
        $region47: #{tpu_custom_call.1} parent=39 // pred_region
          %300 = dma.done %s293, 4096
        $region48: #{tpu_custom_call.1} parent=39 // pred_fallthru
          _
        %s301 = sand.u32 %s24, 1
        %s302 = scalar_lea.sflag [#allocation7], %s301
        %s303 = sand.u32 %s96, 1
        %s304 = smul.addr %s303, 4
        %s305 = scalar_lea.vmem [#allocation8], %s304
        // Predicated region
        $region49: #{tpu_custom_call.1} parent=39 // pred_check
          %p306 = pneg %p109
        $region50: #{tpu_custom_call.1} parent=39 // pred_check_branch
          %308 = sbr.rel (%p306) target = $region52
        $region51: #{tpu_custom_call.1} parent=39 // pred_region
          %309 = dma.done %s302, 64
        $region52: #{tpu_custom_call.1} parent=39 // pred_fallthru
          _
        %s310 = sand.u32 %s122, 1
        %s311 = scalar_lea.sflag [#allocation10], %s310
        %s312 = sand.u32 %s122, 1
        %s313 = smul.addr %s312, 128
        %s314 = scalar_lea.vmem [#allocation9], %s313
        // Predicated region
        $region53: #{tpu_custom_call.1} parent=39 // pred_check
          %p315 = pneg %p135
        $region54: #{tpu_custom_call.1} parent=39 // pred_check_branch
          %317 = sbr.rel (%p315) target = $region56
        $region55: #{tpu_custom_call.1} parent=39 // pred_region
          %318 = dma.done %s311, 2048
        $region56: #{tpu_custom_call.1} parent=39 // pred_fallthru
          _
        %p319 = pneg %p57
        %p320 = pneg %p54
        %s321 = sand.u32 %s24, 1
        %s322 = scalar_lea.sflag [#allocation7], %s321
        %s323 = sand.u32 %s70, 1
        %s324 = smul.addr %s323, 256
        %s325 = scalar_lea.vmem [#allocation6], %s324
        %p326 = pneg %p83
        %p327 = pneg %p80
        %s328 = sand.u32 %s24, 1
        %s329 = scalar_lea.sflag [#allocation7], %s328
        %s330 = sand.u32 %s96, 1
        %s331 = smul.addr %s330, 4
        %s332 = scalar_lea.vmem [#allocation8], %s331
        %p333 = pneg %p109
        %p334 = pneg %p106
        %s335 = sand.u32 %s122, 1
        %s336 = scalar_lea.sflag [#allocation10], %s335
        %s337 = sand.u32 %s122, 1
        %s338 = smul.addr %s337, 128
        %s339 = scalar_lea.vmem [#allocation9], %s338
        %p340 = pneg %p135
        %p341 = pneg %p132
        %p342 = pneg %p156
        %p343 = pneg %p153
        %p344 = pneg %p182
        %p345 = pneg %p179
        %s346 = smul.u32 2, %s28
        %s347 = smul.u32 4, %s29
        %s348 = smul.u32 4, %s29
        %s349 = smul.u32 32, %s29
        %s350 = smul.u32 2, %s28
        %v352 = vld [vmem:[#allocation3] sm:$0xf]
        %v353 = vld [vmem:[#allocation3 + $0x4] sm:$0xf]
        %v354 = vld [vmem:[%s296] sm:$0xff]
        %v355 = vld [vmem:[%s296 + $0x8] sm:$0xff]
        %v356 = vld [vmem:[%s296 + $0x10] sm:$0xff]
        %v357 = vld [vmem:[%s296 + $0x18] sm:$0xff]
        %v358 = vld [vmem:[%s296 + $0x20] sm:$0xff]
        %v359 = vld [vmem:[%s296 + $0x28] sm:$0xff]
        %v360 = vld [vmem:[%s296 + $0x30] sm:$0xff]
        %v361 = vld [vmem:[%s296 + $0x38] sm:$0xff]
        %v362 = vld [vmem:[%s296 + $0x40] sm:$0xff]
        %v363 = vld [vmem:[%s296 + $0x48] sm:$0xff]
        %v364 = vld [vmem:[%s296 + $0x50] sm:$0xff]
        %v365 = vld [vmem:[%s296 + $0x58] sm:$0xff]
        %v366 = vld [vmem:[%s296 + $0x60] sm:$0xff]
        %v367 = vld [vmem:[%s296 + $0x68] sm:$0xff]
        %v368 = vld [vmem:[%s296 + $0x70] sm:$0xff]
        %v369 = vld [vmem:[%s296 + $0x78] sm:$0xff]
        %v370 = vld [vmem:[%s296 + $0x80] sm:$0xff]
        %v371 = vld [vmem:[%s296 + $0x88] sm:$0xff]
        %v372 = vld [vmem:[%s296 + $0x90] sm:$0xff]
        %v373 = vld [vmem:[%s296 + $0x98] sm:$0xff]
        %v374 = vld [vmem:[%s296 + $0xa0] sm:$0xff]
        %v375 = vld [vmem:[%s296 + $0xa8] sm:$0xff]
        %v376 = vld [vmem:[%s296 + $0xb0] sm:$0xff]
        %v377 = vld [vmem:[%s296 + $0xb8] sm:$0xff]
        %v378 = vld [vmem:[%s296 + $0xc0] sm:$0xff]
        %v379 = vld [vmem:[%s296 + $0xc8] sm:$0xff]
        %v380 = vld [vmem:[%s296 + $0xd0] sm:$0xff]
        %v381 = vld [vmem:[%s296 + $0xd8] sm:$0xff]
        %v382 = vld [vmem:[%s296 + $0xe0] sm:$0xff]
        %v383 = vld [vmem:[%s296 + $0xe8] sm:$0xff]
        %v384 = vld [vmem:[%s296 + $0xf0] sm:$0xff]
        %v385 = vld [vmem:[%s296 + $0xf8] sm:$0xff]
        %v386 = vld [vmem:[%s305] sm:$0xf]
        %v388 = vlaneseq
        %v389 = vshrl.u32 %v388, 7
        %v390 = vsub.s32 0, %v389
        %v391 = vrot.slane %v386, %v390
        %v392 = vlaneseq
        %v393 = vshrl.u32 %v392, 7
        %v394 = vsub.s32 1, %v393
        %v395 = vrot.slane %v386, %v394
        %v396 = vlaneseq
        %v397 = vshrl.u32 %v396, 7
        %v398 = vsub.s32 2, %v397
        %v399 = vrot.slane %v386, %v398
        %v400 = vlaneseq
        %v401 = vshrl.u32 %v400, 7
        %v402 = vsub.s32 3, %v401
        %v403 = vrot.slane %v386, %v402
        %v410 = vunpack.c.l.b16 %v352
        %v411 = vunpack.c.l.b16 %v353
        %v412 = vpack.c.b16 %v411, %v410
        %v446 = vunpack.c.l.b16 %v354
        %v447 = vunpack.c.h.b16 %v354
        %v448 = vunpack.c.l.b16 %v355
        %v449 = vunpack.c.h.b16 %v355
        %v450 = vunpack.c.l.b16 %v356
        %v451 = vunpack.c.h.b16 %v356
        %v452 = vunpack.c.l.b16 %v357
        %v453 = vunpack.c.h.b16 %v357
        %v454 = vunpack.c.l.b16 %v358
        %v455 = vunpack.c.h.b16 %v358
        %v456 = vunpack.c.l.b16 %v359
        %v457 = vunpack.c.h.b16 %v359
        %v458 = vunpack.c.l.b16 %v360
        %v459 = vunpack.c.h.b16 %v360
        %v460 = vunpack.c.l.b16 %v361
        %v461 = vunpack.c.h.b16 %v361
        %v462 = vunpack.c.l.b16 %v362
        %v463 = vunpack.c.h.b16 %v362
        %v464 = vunpack.c.l.b16 %v363
        %v465 = vunpack.c.h.b16 %v363
        %v466 = vunpack.c.l.b16 %v364
        %v467 = vunpack.c.h.b16 %v364
        %v468 = vunpack.c.l.b16 %v365
        %v469 = vunpack.c.h.b16 %v365
        %v470 = vunpack.c.l.b16 %v366
        %v471 = vunpack.c.h.b16 %v366
        %v472 = vunpack.c.l.b16 %v367
        %v473 = vunpack.c.h.b16 %v367
        %v474 = vunpack.c.l.b16 %v368
        %v475 = vunpack.c.h.b16 %v368
        %v476 = vunpack.c.l.b16 %v369
        %v477 = vunpack.c.h.b16 %v369
        %v478 = vunpack.c.l.b16 %v370
        %v479 = vunpack.c.h.b16 %v370
        %v480 = vunpack.c.l.b16 %v371
        %v481 = vunpack.c.h.b16 %v371
        %v482 = vunpack.c.l.b16 %v372
        %v483 = vunpack.c.h.b16 %v372
        %v484 = vunpack.c.l.b16 %v373
        %v485 = vunpack.c.h.b16 %v373
        %v486 = vunpack.c.l.b16 %v374
        %v487 = vunpack.c.h.b16 %v374
        %v488 = vunpack.c.l.b16 %v375
        %v489 = vunpack.c.h.b16 %v375
        %v490 = vunpack.c.l.b16 %v376
        %v491 = vunpack.c.h.b16 %v376
        %v492 = vunpack.c.l.b16 %v377
        %v493 = vunpack.c.h.b16 %v377
        %v494 = vunpack.c.l.b16 %v378
        %v495 = vunpack.c.h.b16 %v378
        %v496 = vunpack.c.l.b16 %v379
        %v497 = vunpack.c.h.b16 %v379
        %v498 = vunpack.c.l.b16 %v380
        %v499 = vunpack.c.h.b16 %v380
        %v500 = vunpack.c.l.b16 %v381
        %v501 = vunpack.c.h.b16 %v381
        %v502 = vunpack.c.l.b16 %v382
        %v503 = vunpack.c.h.b16 %v382
        %v504 = vunpack.c.l.b16 %v383
        %v505 = vunpack.c.h.b16 %v383
        %v506 = vunpack.c.l.b16 %v384
        %v507 = vunpack.c.h.b16 %v384
        %v508 = vunpack.c.l.b16 %v385
        %v509 = vunpack.c.h.b16 %v385
        %v510 = vpack.c.b16 %v450, %v446
        %v511 = vpack.c.b16 %v451, %v447
        %v512 = vpack.c.b16 %v452, %v448
        %v513 = vpack.c.b16 %v453, %v449
        %v514 = vpack.c.b16 %v458, %v454
        %v515 = vpack.c.b16 %v459, %v455
        %v516 = vpack.c.b16 %v460, %v456
        %v517 = vpack.c.b16 %v461, %v457
        %v518 = vpack.c.b16 %v466, %v462
        %v519 = vpack.c.b16 %v467, %v463
        %v520 = vpack.c.b16 %v468, %v464
        %v521 = vpack.c.b16 %v469, %v465
        %v522 = vpack.c.b16 %v474, %v470
        %v523 = vpack.c.b16 %v475, %v471
        %v524 = vpack.c.b16 %v476, %v472
        %v525 = vpack.c.b16 %v477, %v473
        %v526 = vpack.c.b16 %v482, %v478
        %v527 = vpack.c.b16 %v483, %v479
        %v528 = vpack.c.b16 %v484, %v480
        %v529 = vpack.c.b16 %v485, %v481
        %v530 = vpack.c.b16 %v490, %v486
        %v531 = vpack.c.b16 %v491, %v487
        %v532 = vpack.c.b16 %v492, %v488
        %v533 = vpack.c.b16 %v493, %v489
        %v534 = vpack.c.b16 %v498, %v494
        %v535 = vpack.c.b16 %v499, %v495
        %v536 = vpack.c.b16 %v500, %v496
        %v537 = vpack.c.b16 %v501, %v497
        %v538 = vpack.c.b16 %v506, %v502
        %v539 = vpack.c.b16 %v507, %v503
        %v540 = vpack.c.b16 %v508, %v504
        %v541 = vpack.c.b16 %v509, %v505
        %574 = vmatprep.subr.bf16.mxu0 %v511
        %575 = vmatpush1.bf16.msra.mxu0 %v510
        %576 = vmatprep.subr.bf16.mxu0 %v515
        %577 = vmatpush1.bf16.msra.mxu0 %v514
        %578 = vmatprep.subr.bf16.mxu0 %v519
        %579 = vmatpush1.bf16.msra.mxu0 %v518
        %580 = vmatprep.subr.bf16.mxu0 %v523
        %581 = vmatpush1.bf16.msra.mxu0 %v522
        %582 = vmatprep.subr.bf16.mxu0 %v527
        %583 = vmatpush1.bf16.msra.mxu0 %v526
        %584 = vmatprep.subr.bf16.mxu0 %v531
        %585 = vmatpush1.bf16.msra.mxu0 %v530
        %586 = vmatprep.subr.bf16.mxu0 %v535
        %587 = vmatpush1.bf16.msra.mxu0 %v534
        %588 = vmatprep.subr.bf16.mxu0 %v539
        %589 = vmatpush1.bf16.msra.mxu0 %v538
        %590 = vmatprep.subr.bf16.mxu0 0
        %591 = vmatpush1.bf16.msra.mxu0 0
        %592 = vmatprep.subr.bf16.mxu0 0
        %593 = vmatpush1.bf16.msra.mxu0 0
        %594 = vmatprep.subr.bf16.mxu0 0
        %595 = vmatpush1.bf16.msra.mxu0 0
        %596 = vmatprep.subr.bf16.mxu0 0
        %597 = vmatpush1.bf16.msra.mxu0 0
        %598 = vmatprep.subr.bf16.mxu0 0
        %599 = vmatpush1.bf16.msra.mxu0 0
        %600 = vmatprep.subr.bf16.mxu0 0
        %601 = vmatpush1.bf16.msra.mxu0 0
        %602 = vmatprep.subr.bf16.mxu0 0
        %603 = vmatpush1.bf16.msra.mxu0 0
        %604 = vmatprep.subr.bf16.mxu0 0
        %605 = vmatpush1.bf16.msra.mxu0 0
        %606 = vmatprep.mubr.bf16.mxu0 0
        %607 = vmatmul.mubr.bf16.gmra.mrb[0].mxu0 %v412
        %v608 = vpop.f32.mrb[0].mxu0
        %v609 = vadd.f32 %v391, %v608
        %v610 = vpop.f32.mrb[0].mxu0
        %v611 = vadd.f32 %v395, %v610
        %v612 = vpop.f32.mrb[0].mxu0
        %v613 = vadd.f32 %v391, %v612
        %v614 = vpop.f32.mrb[0].mxu0
        %v615 = vadd.f32 %v395, %v614
        %616 = vdwg.mxu0
        %617 = vmatprep.subr.bf16.mxu0 %v513
        %618 = vmatpush1.bf16.msra.mxu0 %v512
        %619 = vmatprep.subr.bf16.mxu0 %v517
        %620 = vmatpush1.bf16.msra.mxu0 %v516
        %621 = vmatprep.subr.bf16.mxu0 %v521
        %622 = vmatpush1.bf16.msra.mxu0 %v520
        %623 = vmatprep.subr.bf16.mxu0 %v525
        %624 = vmatpush1.bf16.msra.mxu0 %v524
        %625 = vmatprep.subr.bf16.mxu0 %v529
        %626 = vmatpush1.bf16.msra.mxu0 %v528
        %627 = vmatprep.subr.bf16.mxu0 %v533
        %628 = vmatpush1.bf16.msra.mxu0 %v532
        %629 = vmatprep.subr.bf16.mxu0 %v537
        %630 = vmatpush1.bf16.msra.mxu0 %v536
        %631 = vmatprep.subr.bf16.mxu0 %v541
        %632 = vmatpush1.bf16.msra.mxu0 %v540
        %633 = vmatprep.subr.bf16.mxu0 0
        %634 = vmatpush1.bf16.msra.mxu0 0
        %635 = vmatprep.subr.bf16.mxu0 0
        %636 = vmatpush1.bf16.msra.mxu0 0
        %637 = vmatprep.subr.bf16.mxu0 0
        %638 = vmatpush1.bf16.msra.mxu0 0
        %639 = vmatprep.subr.bf16.mxu0 0
        %640 = vmatpush1.bf16.msra.mxu0 0
        %641 = vmatprep.subr.bf16.mxu0 0
        %642 = vmatpush1.bf16.msra.mxu0 0
        %643 = vmatprep.subr.bf16.mxu0 0
        %644 = vmatpush1.bf16.msra.mxu0 0
        %645 = vmatprep.subr.bf16.mxu0 0
        %646 = vmatpush1.bf16.msra.mxu0 0
        %647 = vmatprep.subr.bf16.mxu0 0
        %648 = vmatpush1.bf16.msra.mxu0 0
        %649 = vmatprep.mubr.bf16.mxu0 0
        %650 = vmatmul.mubr.bf16.gmra.mrb[0].mxu0 %v412
        %v651 = vpop.f32.mrb[0].mxu0
        %v652 = vadd.f32 %v399, %v651
        %v653 = vpop.f32.mrb[0].mxu0
        %v654 = vadd.f32 %v403, %v653
        %v655 = vpop.f32.mrb[0].mxu0
        %v656 = vadd.f32 %v399, %v655
        %v657 = vpop.f32.mrb[0].mxu0
        %v658 = vadd.f32 %v403, %v657
        %659 = vdwg.mxu0
        %v660 = vxor.u32 %v609, 2147483648
        %v661 = vxor.u32 %v611, 2147483648
        %v662 = vxor.u32 %v613, 2147483648
        %v663 = vxor.u32 %v615, 2147483648
        %v664 = vmul.f32 %v660, 1.442695
        %v665 = vpow.pop %v664
        %v666 = vmul.f32 %v661, 1.442695
        %v667 = vpow.pop %v666
        %v668 = vmul.f32 %v662, 1.442695
        %v669 = vpow.pop %v668
        %v670 = vmul.f32 %v663, 1.442695
        %v671 = vpow.pop %v670
        %v672 = vadd.f32 %v665, 1.0
        %v673 = vadd.f32 %v667, 1.0
        %v674 = vadd.f32 %v669, 1.0
        %v675 = vadd.f32 %v671, 1.0
        %v676 = vrcp.pop %v672
        %v677 = vmul.f32 1.0, %v676
        %v678 = vrcp.pop %v673
        %v679 = vmul.f32 1.0, %v678
        %v680 = vrcp.pop %v674
        %v681 = vmul.f32 1.0, %v680
        %v682 = vrcp.pop %v675
        %v683 = vmul.f32 1.0, %v682
        %v684 = vmul.f32 %v609, %v677
        %v685 = vmul.f32 %v611, %v679
        %v686 = vmul.f32 %v613, %v681
        %v687 = vmul.f32 %v615, %v683
        %v688 = vmul.f32 %v684, %v652
        %v689 = vmul.f32 %v685, %v654
        %v690 = vmul.f32 %v686, %v656
        %v691 = vmul.f32 %v687, %v658
        %v692 = vpack.c.bf16 %v690, %v688
        %v693 = vpack.c.bf16 %v691, %v689
        %v694 = vld [vmem:[%s314] sm:$0xf]
        %v695 = vld [vmem:[%s314 + $0x4] sm:$0xf]
        %v696 = vld [vmem:[%s314 + $0x8] sm:$0xf]
        %v697 = vld [vmem:[%s314 + $0xc] sm:$0xf]
        %v698 = vld [vmem:[%s314 + $0x10] sm:$0xf]
        %v699 = vld [vmem:[%s314 + $0x14] sm:$0xf]
        %v700 = vld [vmem:[%s314 + $0x18] sm:$0xf]
        %v701 = vld [vmem:[%s314 + $0x1c] sm:$0xf]
        %v702 = vld [vmem:[%s314 + $0x20] sm:$0xf]
        %v703 = vld [vmem:[%s314 + $0x24] sm:$0xf]
        %v704 = vld [vmem:[%s314 + $0x28] sm:$0xf]
        %v705 = vld [vmem:[%s314 + $0x2c] sm:$0xf]
        %v706 = vld [vmem:[%s314 + $0x30] sm:$0xf]
        %v707 = vld [vmem:[%s314 + $0x34] sm:$0xf]
        %v708 = vld [vmem:[%s314 + $0x38] sm:$0xf]
        %v709 = vld [vmem:[%s314 + $0x3c] sm:$0xf]
        %v710 = vld [vmem:[%s314 + $0x40] sm:$0xf]
        %v711 = vld [vmem:[%s314 + $0x44] sm:$0xf]
        %v712 = vld [vmem:[%s314 + $0x48] sm:$0xf]
        %v713 = vld [vmem:[%s314 + $0x4c] sm:$0xf]
        %v714 = vld [vmem:[%s314 + $0x50] sm:$0xf]
        %v715 = vld [vmem:[%s314 + $0x54] sm:$0xf]
        %v716 = vld [vmem:[%s314 + $0x58] sm:$0xf]
        %v717 = vld [vmem:[%s314 + $0x5c] sm:$0xf]
        %v718 = vld [vmem:[%s314 + $0x60] sm:$0xf]
        %v719 = vld [vmem:[%s314 + $0x64] sm:$0xf]
        %v720 = vld [vmem:[%s314 + $0x68] sm:$0xf]
        %v721 = vld [vmem:[%s314 + $0x6c] sm:$0xf]
        %v722 = vld [vmem:[%s314 + $0x70] sm:$0xf]
        %v723 = vld [vmem:[%s314 + $0x74] sm:$0xf]
        %v724 = vld [vmem:[%s314 + $0x78] sm:$0xf]
        %v725 = vld [vmem:[%s314 + $0x7c] sm:$0xf]
        %v758 = vunpack.c.l.b16 %v694
        %v759 = vunpack.c.l.b16 %v695
        %v760 = vunpack.c.l.b16 %v696
        %v761 = vunpack.c.l.b16 %v697
        %v762 = vunpack.c.l.b16 %v698
        %v763 = vunpack.c.l.b16 %v699
        %v764 = vunpack.c.l.b16 %v700
        %v765 = vunpack.c.l.b16 %v701
        %v766 = vunpack.c.l.b16 %v702
        %v767 = vunpack.c.l.b16 %v703
        %v768 = vunpack.c.l.b16 %v704
        %v769 = vunpack.c.l.b16 %v705
        %v770 = vunpack.c.l.b16 %v706
        %v771 = vunpack.c.l.b16 %v707
        %v772 = vunpack.c.l.b16 %v708
        %v773 = vunpack.c.l.b16 %v709
        %v774 = vunpack.c.l.b16 %v710
        %v775 = vunpack.c.l.b16 %v711
        %v776 = vunpack.c.l.b16 %v712
        %v777 = vunpack.c.l.b16 %v713
        %v778 = vunpack.c.l.b16 %v714
        %v779 = vunpack.c.l.b16 %v715
        %v780 = vunpack.c.l.b16 %v716
        %v781 = vunpack.c.l.b16 %v717
        %v782 = vunpack.c.l.b16 %v718
        %v783 = vunpack.c.l.b16 %v719
        %v784 = vunpack.c.l.b16 %v720
        %v785 = vunpack.c.l.b16 %v721
        %v786 = vunpack.c.l.b16 %v722
        %v787 = vunpack.c.l.b16 %v723
        %v788 = vunpack.c.l.b16 %v724
        %v789 = vunpack.c.l.b16 %v725
        %v790 = vpack.c.b16 %v759, %v758
        %v791 = vpack.c.b16 %v761, %v760
        %v792 = vpack.c.b16 %v763, %v762
        %v793 = vpack.c.b16 %v765, %v764
        %v794 = vpack.c.b16 %v767, %v766
        %v795 = vpack.c.b16 %v769, %v768
        %v796 = vpack.c.b16 %v771, %v770
        %v797 = vpack.c.b16 %v773, %v772
        %v798 = vpack.c.b16 %v775, %v774
        %v799 = vpack.c.b16 %v777, %v776
        %v800 = vpack.c.b16 %v779, %v778
        %v801 = vpack.c.b16 %v781, %v780
        %v802 = vpack.c.b16 %v783, %v782
        %v803 = vpack.c.b16 %v785, %v784
        %v804 = vpack.c.b16 %v787, %v786
        %v805 = vpack.c.b16 %v789, %v788
        %822 = vmatprep.subr.bf16.mxu0 0
        %823 = vmatpush1.bf16.msra.mxu0 %v790
        %824 = vmatprep.subr.bf16.mxu0 0
        %825 = vmatpush1.bf16.msra.mxu0 %v791
        %826 = vmatprep.subr.bf16.mxu0 0
        %827 = vmatpush1.bf16.msra.mxu0 %v792
        %828 = vmatprep.subr.bf16.mxu0 0
        %829 = vmatpush1.bf16.msra.mxu0 %v793
        %830 = vmatprep.subr.bf16.mxu0 0
        %831 = vmatpush1.bf16.msra.mxu0 %v794
        %832 = vmatprep.subr.bf16.mxu0 0
        %833 = vmatpush1.bf16.msra.mxu0 %v795
        %834 = vmatprep.subr.bf16.mxu0 0
        %835 = vmatpush1.bf16.msra.mxu0 %v796
        %836 = vmatprep.subr.bf16.mxu0 0
        %837 = vmatpush1.bf16.msra.mxu0 %v797
        %838 = vmatprep.subr.bf16.mxu0 0
        %839 = vmatpush1.bf16.msra.mxu0 %v798
        %840 = vmatprep.subr.bf16.mxu0 0
        %841 = vmatpush1.bf16.msra.mxu0 %v799
        %842 = vmatprep.subr.bf16.mxu0 0
        %843 = vmatpush1.bf16.msra.mxu0 %v800
        %844 = vmatprep.subr.bf16.mxu0 0
        %845 = vmatpush1.bf16.msra.mxu0 %v801
        %846 = vmatprep.subr.bf16.mxu0 0
        %847 = vmatpush1.bf16.msra.mxu0 %v802
        %848 = vmatprep.subr.bf16.mxu0 0
        %849 = vmatpush1.bf16.msra.mxu0 %v803
        %850 = vmatprep.subr.bf16.mxu0 0
        %851 = vmatpush1.bf16.msra.mxu0 %v804
        %852 = vmatprep.subr.bf16.mxu0 0
        %853 = vmatpush1.bf16.msra.mxu0 %v805
        %854 = vmatprep.mubr.bf16.mxu0 %v693
        %855 = vmatmul.mubr.bf16.gmra.mrb[0].mxu0 %v692
        %v856 = vpop.f32.mrb[0].mxu0
        %v857 = vadd.f32 0.0, %v856
        %v858 = vpop.f32.mrb[0].mxu0
        %v859 = vpop.f32.mrb[0].mxu0
        %v860 = vadd.f32 0.0, %v859
        %v861 = vpop.f32.mrb[0].mxu0
        %862 = vdwg.mxu0
        %p863 = scmp.eq.s32.totalorder %s29, 0
        // Predicated region
        $region57: #{tpu_custom_call.1} parent=39 // pred_check
          %p864 = pneg %p863
        $region58: #{tpu_custom_call.1} parent=39 // pred_check_branch
          %866 = sbr.rel (%p864) target = $region60
        $region59: #{tpu_custom_call.1} parent=39 // pred_region
          %v867 = vld [vmem:[%s4] sm:$0x1]
          %v869 = vlaneseq
          %v870 = vshrl.u32 %v869, 7
          %v871 = vsub.s32 0, %v870
          %v872 = vrot.slane %v867, %v871
          %874 = vst [vmem:[#allocation2] sm:$0xff] %v872
          %875 = vst [vmem:[#allocation2 + $0x8] sm:$0xff] %v872
        $region60: #{tpu_custom_call.1} parent=39 // pred_fallthru
          _
        %v876 = vld [vmem:[#allocation2] sm:$0xff]
        %v877 = vld [vmem:[#allocation2 + $0x8] sm:$0xff]
        %v878 = vadd.f32 %v876, %v857
        %v879 = vadd.f32 %v877, %v860
        %p880 = scmp.lt.s32.totalorder %s29, 1
        // Predicated region
        $region61: #{tpu_custom_call.1} parent=39 // pred_check
          %p881 = pneg %p880
        $region62: #{tpu_custom_call.1} parent=39 // pred_check_branch
          %883 = sbr.rel (%p881) target = $region64
        $region63: #{tpu_custom_call.1} parent=39 // pred_region
          %884 = vst [vmem:[#allocation2] sm:$0xff] %v878
          %885 = vst [vmem:[#allocation2 + $0x8] sm:$0xff] %v879
        $region64: #{tpu_custom_call.1} parent=39 // pred_fallthru
          _
        %p886 = scmp.eq.s32.totalorder %s29, 1
        // Predicated region
        $region65: #{tpu_custom_call.1} parent=39 // pred_check
          %p887 = pneg %p886
        $region66: #{tpu_custom_call.1} parent=39 // pred_check_branch
          %889 = sbr.rel (%p887) target = $region68
        $region67: #{tpu_custom_call.1} parent=39 // pred_region
          %890 = vst [vmem:[#allocation11] sm:$0xff] %v878
          %891 = vst [vmem:[#allocation11 + $0x8] sm:$0xff] %v879
        $region68: #{tpu_custom_call.1} parent=39 // pred_fallthru
          _
        // Predicated region
        $region69: #{tpu_custom_call.1} parent=39 // pred_check
          %p892 = pneg %p179
        $region70: #{tpu_custom_call.1} parent=39 // pred_check_branch
          %894 = sbr.rel (%p892) target = $region72
        $region71: #{tpu_custom_call.1} parent=39 // pred_region
          %s895 = smul.u32 2, %s28
          %s897 = ssub.s32 256, 256
          %898 = vsyncadd [#allocation5], %s897
          %s899 = smul.addr %s895, 128
          %s900 = scalar_lea.hbm %s5, %s899
          %s901 = sshll.u32 [#allocation11], 4
          %s902 = int_to_ptr.vmem [resolvable:$true] %s901
          %907 = dma.vmem_to_hbm [thread:$0]  %s902, 256, %s900, [#allocation5], 128, 128, 8
        $region72: #{tpu_custom_call.1} parent=39 // pred_fallthru
          _
        // Predicated region
        $region73: #{tpu_custom_call.1} parent=39 // pred_check
          %p908 = pneg %p179
        $region74: #{tpu_custom_call.1} parent=39 // pred_check_branch
          %910 = sbr.rel (%p908) target = $region76
        $region75: #{tpu_custom_call.1} parent=39 // pred_region
          %911 = dma.done [#allocation5], 256
        $region76: #{tpu_custom_call.1} parent=39 // pred_fallthru
          _
      $region40: #{tpu_custom_call.1} parent=5 // pred_fallthru
        _
      %p912 = scmp.le.s32.totalorder 2, %s19
      // Predicated region
      $region77: #{tpu_custom_call.1} parent=5 // pred_check
        %p913 = pneg %p912
      $region78: #{tpu_custom_call.1} parent=5 // pred_check_branch
        %915 = sbr.rel (%p913) target = $region80
      $region79: #{tpu_custom_call.1} parent=5 // pred_region
        %s916 = ssub.s32 %s19, 2
      $region80: #{tpu_custom_call.1} parent=5 // pred_fallthru
        _
    $region6: #{tpu_custom_call.1} parent=1 // loop_footer
      %s23 = sadd.s32 1, %s19
    $region7: #{tpu_custom_call.1} parent=1 // loop_footer_branch
      %18 = sbr.rel target = $region3
    $region8: #{tpu_custom_call.1} parent=1 // loop_exit
      _
    %917 = vsyncpa [#allocation4], 1
    %s918 = scalar_lea.sflag [#allocation4], 1
    %919 = vsyncpa %s918, 1
    %920 = vsyncpa [#allocation7], 1
    %s921 = scalar_lea.sflag [#allocation7], 1
    %922 = vsyncpa %s921, 1
    %923 = vsyncpa [#allocation10], 1
    %s924 = scalar_lea.sflag [#allocation10], 1
    %925 = vsyncpa %s924, 1
    %926 = vsyncpa [#allocation5], 1
    %s927 = scalar_lea.sflag [#allocation5], 1
    %928 = vsyncpa %s927, 1

</llo_original>
